<compile_context>
chip_gen: v6e
topology: v6e:2x2x1
jax: 0.10.0
libtpu: 0.0.40
codegen_flags: <defaults>
</compile_context>

<pallas_src>
import jax
import jax.numpy as jnp
import numpy as np
from jax.experimental import pallas as pl
from jax.experimental.pallas import tpu as pltpu

_LANES = 128
_SUBLANES = 8


def _max_rows(n_cls: int, budget_bytes: int = 10 * 1024 * 1024) -> int:
    """Rows-of-128 per tile so double-buffered in/out streams fit comfortably
    under the smallest default scoped-VMEM budget (v5e: 16 MiB)."""
    per_row = 2 * _LANES * 4 * (13 + n_cls)  # all streams, f32 bound, x2 buffers
    rows = budget_bytes // per_row
    return max(_SUBLANES, min(512, (rows // _SUBLANES) * _SUBLANES))


def _plan_spatial(S: int, max_rows: int):
    """Pad the flat spatial axis so it is a whole number of lane+sublane-dense
    (TILE_R, 128) tiles (no partial / masked blocks anywhere)."""
    rows_needed = pl.cdiv(S, _LANES)
    if rows_needed <= max_rows:
        rows, tile_r, n_tiles = rows_needed, rows_needed, 1
    else:
        tile_r = (max_rows // _SUBLANES) * _SUBLANES
        rows = pl.cdiv(rows_needed, tile_r) * tile_r
        n_tiles = rows // tile_r
    return rows * _LANES, rows, tile_r, n_tiles


def fcos_atss_inference(t_ltrb, conf_logits, cls_logits, *, stride, img_size):
    """Pallas implementation of FCOS_ATSS_Layer.forward with labels=None."""
    img_h, img_w = img_size
    nB, nH, nW, _ = t_ltrb.shape
    nCls = cls_logits.shape[-1]
    assert conf_logits.shape == (nB, nH, nW, 1)
    assert cls_logits.shape == (nB, nH, nW, nCls)

    S = nH * nW
    S_pad, R, TILE_R, n_tiles = _plan_spatial(S, _max_rows(nCls))

    strd = float(stride)
    half = strd / 2.0
    img_wf = float(img_w)
    img_hf = float(img_h)

    # ---- wrapper-side layout plumbing (native dtype kept; no upcasts) -------
    def pad_s(x):  # pad the flat spatial axis (axis 1) up to S_pad
        if S_pad != S:
            pad = [(0, 0)] * x.ndim
            pad[1] = (0, S_pad - S)
            x = jnp.pad(x, pad)
        return x

    def to_cm(x, C):  # (nB, nH, nW, C) -> (nB, C, R, 128) channel-major
        x = pad_s(x.reshape(nB, S, C))
        return jnp.transpose(x, (0, 2, 1)).reshape(nB, C, R, _LANES)

    t_cm = to_cm(t_ltrb, 4)
    cls_cm = to_cm(cls_logits, nCls)
    conf_rs = pad_s(conf_logits.reshape(nB, S)).reshape(nB, R, _LANES)  # free reshape

    # Grid-cell centers, computed once outside the kernel (constant under jit).
    s_idx = jnp.arange(S_pad, dtype=jnp.int32)
    gx = (s_idx % nW).astype(jnp.float32) * strd + half
    gy = (s_idx // nW).astype(jnp.float32) * strd + half
    centers = jnp.stack([gx, gy], axis=0).reshape(2, R, _LANES)

    def kernel(ctr_ref, t_ref, conf_ref, cls_ref, out_ref, idx_ref):
        # ctr_ref : (2, TILE_R, 128) f32    row0 = x centers, row1 = y centers
        # t_ref   : (4, TILE_R, 128)        ltrb logits (native dtype)
        # conf_ref: (TILE_R, 128)
        # cls_ref : (nCls, TILE_R, 128)
        # out_ref : (5, TILE_R, 128) f32    cx, cy, w, h, score
        # idx_ref : (TILE_R, 128)    int32
        x_ = ctr_ref[0]
        y_ = ctr_ref[1]

        # ltrb_setting = 'exp_sl1' -> p_ltrb = exp(t) * stride
        l_ = jnp.exp(t_ref[0].astype(jnp.float32)) * strd
        t_ = jnp.exp(t_ref[1].astype(jnp.float32)) * strd
        r_ = jnp.exp(t_ref[2].astype(jnp.float32)) * strd
        b_ = jnp.exp(t_ref[3].astype(jnp.float32)) * strd

        # _ltrb_to(..., 'x1y1x2y2') + per-coordinate clamping
        x1 = jnp.clip(x_ - l_, 0.0, img_wf)
        y1 = jnp.clip(y_ - t_, 0.0, img_hf)
        x2 = jnp.clip(x_ + r_, 0.0, img_wf)
        y2 = jnp.clip(y_ + b_, 0.0, img_hf)

        # _xyxy_to_xywh -> four dense (TILE_R, 128) stores.
        out_ref[0] = (x1 + x2) * 0.5
        out_ref[1] = (y1 + y2) * 0.5
        out_ref[2] = x2 - x1
        out_ref[3] = y2 - y1

        # torch.max(p_cls, dim=-1): argmax on raw logits (sigmoid is strictly
        # increasing); strict '>' preserves first-index-on-tie semantics.
        best = cls_ref[0].astype(jnp.float32)
        best_idx = jnp.zeros((TILE_R, _LANES), jnp.int32)
        for k in range(1, nCls):
            lk = cls_ref[k].astype(jnp.float32)
            upd = lk > best
            best = jnp.where(upd, lk, best)
            best_idx = jnp.where(upd, jnp.int32(k), best_idx)

        # Only two sigmoids per element: the winning class + conf.
        p_best = jax.nn.sigmoid(best)
        p_conf = jax.nn.sigmoid(conf_ref[...].astype(jnp.float32))

        idx_ref[...] = best_idx
        out_ref[4] = jnp.sqrt(p_conf * p_best)

    grid_spec = pl.GridSpec(
        grid=(nB, n_tiles),
        in_specs=[
            pl.BlockSpec((2, TILE_R, _LANES), lambda b, j: (0, j, 0)),
            pl.BlockSpec((None, 4, TILE_R, _LANES), lambda b, j: (b, 0, j, 0)),
            pl.BlockSpec((None, TILE_R, _LANES), lambda b, j: (b, j, 0)),
            pl.BlockSpec((None, nCls, TILE_R, _LANES), lambda b, j: (b, 0, j, 0)),
        ],
        out_specs=[
            pl.BlockSpec((None, 5, TILE_R, _LANES), lambda b, j: (b, 0, j, 0)),
            pl.BlockSpec((None, TILE_R, _LANES), lambda b, j: (b, j, 0)),
        ],
    )

    out5, cls_idx = pl.pallas_call(
        kernel,
        out_shape=(
            jax.ShapeDtypeStruct((nB, 5, R, _LANES), jnp.float32),
            jax.ShapeDtypeStruct((nB, R, _LANES), jnp.int32),
        ),
        grid_spec=grid_spec,
        compiler_params=pltpu.CompilerParams(
            dimension_semantics=("parallel", "parallel"),
        ),
    )(centers, t_cm, conf_rs, cls_cm)

    # Output plumbing: class_idx / score are free reshapes; bbox needs one
    # channel-major -> spatial-major transpose to honour the (nB, S, 4) API.
    bbox = jnp.transpose(out5[:, :4].reshape(nB, 4, S_pad), (0, 2, 1))[:, :S, :]
    score = out5[:, 4].reshape(nB, S_pad)[:, :S]
    class_idx = cls_idx.reshape(nB, S_pad)[:, :S]

    preds = {"bbox": bbox, "class_idx": class_idx, "score": score}
    return preds, None


def _reference_jax(t_ltrb, conf_logits, cls_logits, *, stride, img_size):
    """Pure-JAX reference of the same math (for correctness check)."""
    img_h, img_w = img_size
    nB, nH, nW, _ = t_ltrb.shape
    p_ltrb = jnp.exp(t_ltrb.astype(jnp.float32)) * stride
    y_ = (jnp.arange(nH, dtype=jnp.float32) * stride + stride / 2)[None, :, None]
    x_ = (jnp.arange(nW, dtype=jnp.float32) * stride + stride / 2)[None, None, :]
    x1 = jnp.clip(x_ - p_ltrb[..., 0], 0.0, img_w)
    y1 = jnp.clip(y_ - p_ltrb[..., 1], 0.0, img_h)
    x2 = jnp.clip(x_ + p_ltrb[..., 2], 0.0, img_w)
    y2 = jnp.clip(y_ + p_ltrb[..., 3], 0.0, img_h)
    p_xywh = jnp.stack([(x1 + x2) / 2, (y1 + y2) / 2, x2 - x1, y2 - y1], axis=-1)
    p_conf = jax.nn.sigmoid(conf_logits[..., 0].astype(jnp.float32))
    p_cls = jax.nn.sigmoid(cls_logits.astype(jnp.float32))
    cls_score = jnp.max(p_cls, axis=-1)
    cls_idx = jnp.argmax(p_cls, axis=-1)
    score = jnp.sqrt(p_conf * cls_score)
    return {
        "bbox": p_xywh.reshape(nB, nH * nW, 4),
        "class_idx": cls_idx.reshape(nB, nH * nW).astype(jnp.int32),
        "score": score.reshape(nB, nH * nW),
    }


if __name__ == "__main__":
    run = jax.jit(fcos_atss_inference, static_argnames=("stride", "img_size"))

    def _check(case, nB, stride, img_size, n_cls):
        img_h, img_w = img_size
        nH, nW = img_h // stride, img_w // stride
        key = jax.random.fold_in(jax.random.PRNGKey(0), case)
        k1, k2, k3 = jax.random.split(key, 3)
        t_ltrb = jax.random.normal(k1, (nB, nH, nW, 4), dtype=jnp.float32) * 0.5
        conf_logits = jax.random.normal(k2, (nB, nH, nW, 1), dtype=jnp.float32)
        cls_logits = jax.random.normal(k3, (nB, nH, nW, n_cls), dtype=jnp.float32)

        preds, loss = run(t_ltrb, conf_logits, cls_logits,
                          stride=stride, img_size=img_size)
        jax.block_until_ready(preds)

        ref = _reference_jax(t_ltrb, conf_logits, cls_logits,
                             stride=stride, img_size=img_size)
        np.testing.assert_allclose(np.asarray(preds["bbox"]),
                                   np.asarray(ref["bbox"]), rtol=1e-5, atol=1e-5)
        np.testing.assert_allclose(np.asarray(preds["score"]),
                                   np.asarray(ref["score"]), rtol=1e-5, atol=1e-5)
        np.testing.assert_array_equal(np.asarray(preds["class_idx"]),
                                      np.asarray(ref["class_idx"]))
        assert loss is None

    # cfg-equivalent constants (deterministic, in-script):
    # stride = cfg['model.fpn.out_strides'][level_i]; n_cls = cfg['general.num_class']
    _check(case=0, nB=2, stride=8, img_size=(128, 128), n_cls=8)  # S=256 (128-aligned)
    _check(case=1, nB=2, stride=8, img_size=(120, 104), n_cls=8)  # S=195 (padded path)
    print("KERNEL_OK")
</pallas_src>

<mosaic_0001>
module attributes {stable_mosaic.version = 11 : i64} {
  func.func @kernel(%arg0: i32, %arg1: i32, %arg2: memref<2x2x128xf32, #tpu.memory_space<vmem>>, %arg3: memref<1x4x2x128xf32, #tpu.memory_space<vmem>>, %arg4: memref<1x2x128xf32, #tpu.memory_space<vmem>>, %arg5: memref<1x8x2x128xf32, #tpu.memory_space<vmem>>, %arg6: memref<1x5x2x128xf32, #tpu.memory_space<vmem>>, %arg7: memref<1x2x128xi32, #tpu.memory_space<vmem>>) attributes {dimension_semantics = [#tpu.dimension_semantics<parallel>, #tpu.dimension_semantics<parallel>], iteration_bounds = array<i64: 2, 1>, scalar_prefetch = 0 : i64, scratch_operands = 0 : i64, tpu.core_type = #tpu.core_type<tc>, window_params = [{transform_indices = @transform_0, window_bounds = array<i64: 2, 2, 128>}, {transform_indices = @transform_1, window_bounds = array<i64: 1, 4, 2, 128>}, {transform_indices = @transform_2, window_bounds = array<i64: 1, 2, 128>}, {transform_indices = @transform_3, window_bounds = array<i64: 1, 8, 2, 128>}, {transform_indices = @transform_4, window_bounds = array<i64: 1, 5, 2, 128>}, {transform_indices = @transform_5, window_bounds = array<i64: 1, 2, 128>}]} {
    %c0 = arith.constant 0 : index
    %c0_0 = arith.constant 0 : index
    %c0_1 = arith.constant 0 : index
    %0 = vector.load %arg2[%c0, %c0_0, %c0_1] : memref<2x2x128xf32, #tpu.memory_space<vmem>>, vector<1x2x128xf32>
    %1 = vector.shape_cast %0 : vector<1x2x128xf32> to vector<2x128xf32>
    %c1 = arith.constant 1 : index
    %c0_2 = arith.constant 0 : index
    %c0_3 = arith.constant 0 : index
    %2 = vector.load %arg2[%c1, %c0_2, %c0_3] : memref<2x2x128xf32, #tpu.memory_space<vmem>>, vector<1x2x128xf32>
    %3 = vector.shape_cast %2 : vector<1x2x128xf32> to vector<2x128xf32>
    %c0_4 = arith.constant 0 : index
    %c0_5 = arith.constant 0 : index
    %c0_6 = arith.constant 0 : index
    %c0_7 = arith.constant 0 : index
    %4 = vector.load %arg3[%c0_4, %c0_5, %c0_6, %c0_7] : memref<1x4x2x128xf32, #tpu.memory_space<vmem>>, vector<1x1x2x128xf32>
    %5 = vector.shape_cast %4 : vector<1x1x2x128xf32> to vector<2x128xf32>
    %6 = math.exp %5 : vector<2x128xf32>
    %cst = arith.constant 8.000000e+00 : f32
    %7 = vector.broadcast %cst : f32 to vector<2x128xf32>
    %8 = arith.mulf %6, %7 : vector<2x128xf32>
    %c0_8 = arith.constant 0 : index
    %c1_9 = arith.constant 1 : index
    %c0_10 = arith.constant 0 : index
    %c0_11 = arith.constant 0 : index
    %9 = vector.load %arg3[%c0_8, %c1_9, %c0_10, %c0_11] : memref<1x4x2x128xf32, #tpu.memory_space<vmem>>, vector<1x1x2x128xf32>
    %10 = vector.shape_cast %9 : vector<1x1x2x128xf32> to vector<2x128xf32>
    %11 = math.exp %10 : vector<2x128xf32>
    %cst_12 = arith.constant 8.000000e+00 : f32
    %12 = vector.broadcast %cst_12 : f32 to vector<2x128xf32>
    %13 = arith.mulf %11, %12 : vector<2x128xf32>
    %c0_13 = arith.constant 0 : index
    %c2 = arith.constant 2 : index
    %c0_14 = arith.constant 0 : index
    %c0_15 = arith.constant 0 : index
    %14 = vector.load %arg3[%c0_13, %c2, %c0_14, %c0_15] : memref<1x4x2x128xf32, #tpu.memory_space<vmem>>, vector<1x1x2x128xf32>
    %15 = vector.shape_cast %14 : vector<1x1x2x128xf32> to vector<2x128xf32>
    %16 = math.exp %15 : vector<2x128xf32>
    %cst_16 = arith.constant 8.000000e+00 : f32
    %17 = vector.broadcast %cst_16 : f32 to vector<2x128xf32>
    %18 = arith.mulf %16, %17 : vector<2x128xf32>
    %c0_17 = arith.constant 0 : index
    %c3 = arith.constant 3 : index
    %c0_18 = arith.constant 0 : index
    %c0_19 = arith.constant 0 : index
    %19 = vector.load %arg3[%c0_17, %c3, %c0_18, %c0_19] : memref<1x4x2x128xf32, #tpu.memory_space<vmem>>, vector<1x1x2x128xf32>
    %20 = vector.shape_cast %19 : vector<1x1x2x128xf32> to vector<2x128xf32>
    %21 = math.exp %20 : vector<2x128xf32>
    %cst_20 = arith.constant 8.000000e+00 : f32
    %22 = vector.broadcast %cst_20 : f32 to vector<2x128xf32>
    %23 = arith.mulf %21, %22 : vector<2x128xf32>
    %24 = arith.subf %1, %8 : vector<2x128xf32>
    %cst_21 = arith.constant 0.000000e+00 : f32
    %cst_22 = arith.constant 1.280000e+02 : f32
    %25 = vector.broadcast %cst_21 : f32 to vector<2x128xf32>
    %26 = arith.maximumf %25, %24 : vector<2x128xf32>
    %27 = vector.broadcast %cst_22 : f32 to vector<2x128xf32>
    %28 = arith.minimumf %27, %26 : vector<2x128xf32>
    %29 = arith.subf %3, %13 : vector<2x128xf32>
    %cst_23 = arith.constant 0.000000e+00 : f32
    %cst_24 = arith.constant 1.280000e+02 : f32
    %30 = vector.broadcast %cst_23 : f32 to vector<2x128xf32>
    %31 = arith.maximumf %30, %29 : vector<2x128xf32>
    %32 = vector.broadcast %cst_24 : f32 to vector<2x128xf32>
    %33 = arith.minimumf %32, %31 : vector<2x128xf32>
    %34 = arith.addf %1, %18 : vector<2x128xf32>
    %cst_25 = arith.constant 0.000000e+00 : f32
    %cst_26 = arith.constant 1.280000e+02 : f32
    %35 = vector.broadcast %cst_25 : f32 to vector<2x128xf32>
    %36 = arith.maximumf %35, %34 : vector<2x128xf32>
    %37 = vector.broadcast %cst_26 : f32 to vector<2x128xf32>
    %38 = arith.minimumf %37, %36 : vector<2x128xf32>
    %39 = arith.addf %3, %23 : vector<2x128xf32>
    %cst_27 = arith.constant 0.000000e+00 : f32
    %cst_28 = arith.constant 1.280000e+02 : f32
    %40 = vector.broadcast %cst_27 : f32 to vector<2x128xf32>
    %41 = arith.maximumf %40, %39 : vector<2x128xf32>
    %42 = vector.broadcast %cst_28 : f32 to vector<2x128xf32>
    %43 = arith.minimumf %42, %41 : vector<2x128xf32>
    %44 = arith.addf %28, %38 : vector<2x128xf32>
    %cst_29 = arith.constant 5.000000e-01 : f32
    %45 = vector.broadcast %cst_29 : f32 to vector<2x128xf32>
    %46 = arith.mulf %44, %45 : vector<2x128xf32>
    %c0_30 = arith.constant 0 : index
    %c0_31 = arith.constant 0 : index
    %c0_32 = arith.constant 0 : index
    %c0_33 = arith.constant 0 : index
    %47 = vector.load %arg6[%c0_30, %c0_31, %c0_32, %c0_33] : memref<1x5x2x128xf32, #tpu.memory_space<vmem>>, vector<1x1x2x128xf32>
    %48 = vector.shape_cast %47 : vector<1x1x2x128xf32> to vector<2x128xf32>
    %49 = vector.shape_cast %46 : vector<2x128xf32> to vector<1x1x2x128xf32>
    tpu.vector_store %arg6[%c0_30, %c0_31, %c0_32, %c0_33], %49 {strides = array<i32>} : memref<1x5x2x128xf32, #tpu.memory_space<vmem>>, vector<1x1x2x128xf32>,
    %50 = arith.addf %33, %43 : vector<2x128xf32>
    %cst_34 = arith.constant 5.000000e-01 : f32
    %51 = vector.broadcast %cst_34 : f32 to vector<2x128xf32>
    %52 = arith.mulf %50, %51 : vector<2x128xf32>
    %c0_35 = arith.constant 0 : index
    %c1_36 = arith.constant 1 : index
    %c0_37 = arith.constant 0 : index
    %c0_38 = arith.constant 0 : index
    %53 = vector.load %arg6[%c0_35, %c1_36, %c0_37, %c0_38] : memref<1x5x2x128xf32, #tpu.memory_space<vmem>>, vector<1x1x2x128xf32>
    %54 = vector.shape_cast %53 : vector<1x1x2x128xf32> to vector<2x128xf32>
    %55 = vector.shape_cast %52 : vector<2x128xf32> to vector<1x1x2x128xf32>
    tpu.vector_store %arg6[%c0_35, %c1_36, %c0_37, %c0_38], %55 {strides = array<i32>} : memref<1x5x2x128xf32, #tpu.memory_space<vmem>>, vector<1x1x2x128xf32>,
    %56 = arith.subf %38, %28 : vector<2x128xf32>
    %c0_39 = arith.constant 0 : index
    %c2_40 = arith.constant 2 : index
    %c0_41 = arith.constant 0 : index
    %c0_42 = arith.constant 0 : index
    %57 = vector.load %arg6[%c0_39, %c2_40, %c0_41, %c0_42] : memref<1x5x2x128xf32, #tpu.memory_space<vmem>>, vector<1x1x2x128xf32>
    %58 = vector.shape_cast %57 : vector<1x1x2x128xf32> to vector<2x128xf32>
    %59 = vector.shape_cast %56 : vector<2x128xf32> to vector<1x1x2x128xf32>
    tpu.vector_store %arg6[%c0_39, %c2_40, %c0_41, %c0_42], %59 {strides = array<i32>} : memref<1x5x2x128xf32, #tpu.memory_space<vmem>>, vector<1x1x2x128xf32>,
    %60 = arith.subf %43, %33 : vector<2x128xf32>
    %c0_43 = arith.constant 0 : index
    %c3_44 = arith.constant 3 : index
    %c0_45 = arith.constant 0 : index
    %c0_46 = arith.constant 0 : index
    %61 = vector.load %arg6[%c0_43, %c3_44, %c0_45, %c0_46] : memref<1x5x2x128xf32, #tpu.memory_space<vmem>>, vector<1x1x2x128xf32>
    %62 = vector.shape_cast %61 : vector<1x1x2x128xf32> to vector<2x128xf32>
    %63 = vector.shape_cast %60 : vector<2x128xf32> to vector<1x1x2x128xf32>
    tpu.vector_store %arg6[%c0_43, %c3_44, %c0_45, %c0_46], %63 {strides = array<i32>} : memref<1x5x2x128xf32, #tpu.memory_space<vmem>>, vector<1x1x2x128xf32>,
    %c0_47 = arith.constant 0 : index
    %c0_48 = arith.constant 0 : index
    %c0_49 = arith.constant 0 : index
    %c0_50 = arith.constant 0 : index
    %64 = vector.load %arg5[%c0_47, %c0_48, %c0_49, %c0_50] : memref<1x8x2x128xf32, #tpu.memory_space<vmem>>, vector<1x1x2x128xf32>
    %65 = vector.shape_cast %64 : vector<1x1x2x128xf32> to vector<2x128xf32>
    %c0_i32 = arith.constant 0 : i32
    %66 = vector.broadcast %c0_i32 : i32 to vector<2x128xi32>
    %c0_51 = arith.constant 0 : index
    %c1_52 = arith.constant 1 : index
    %c0_53 = arith.constant 0 : index
    %c0_54 = arith.constant 0 : index
    %67 = vector.load %arg5[%c0_51, %c1_52, %c0_53, %c0_54] : memref<1x8x2x128xf32, #tpu.memory_space<vmem>>, vector<1x1x2x128xf32>
    %68 = vector.shape_cast %67 : vector<1x1x2x128xf32> to vector<2x128xf32>
    %69 = arith.cmpf ogt, %68, %65 : vector<2x128xf32>
    %70 = arith.select %69, %68, %65 : vector<2x128xi1>, vector<2x128xf32>
    %c1_i32 = arith.constant 1 : i32
    %71 = vector.broadcast %c1_i32 : i32 to vector<2x128xi32>
    %72 = arith.select %69, %71, %66 : vector<2x128xi1>, vector<2x128xi32>
    %c0_55 = arith.constant 0 : index
    %c2_56 = arith.constant 2 : index
    %c0_57 = arith.constant 0 : index
    %c0_58 = arith.constant 0 : index
    %73 = vector.load %arg5[%c0_55, %c2_56, %c0_57, %c0_58] : memref<1x8x2x128xf32, #tpu.memory_space<vmem>>, vector<1x1x2x128xf32>
    %74 = vector.shape_cast %73 : vector<1x1x2x128xf32> to vector<2x128xf32>
    %75 = arith.cmpf ogt, %74, %70 : vector<2x128xf32>
    %76 = arith.select %75, %74, %70 : vector<2x128xi1>, vector<2x128xf32>
    %c2_i32 = arith.constant 2 : i32
    %77 = vector.broadcast %c2_i32 : i32 to vector<2x128xi32>
    %78 = arith.select %75, %77, %72 : vector<2x128xi1>, vector<2x128xi32>
    %c0_59 = arith.constant 0 : index
    %c3_60 = arith.constant 3 : index
    %c0_61 = arith.constant 0 : index
    %c0_62 = arith.constant 0 : index
    %79 = vector.load %arg5[%c0_59, %c3_60, %c0_61, %c0_62] : memref<1x8x2x128xf32, #tpu.memory_space<vmem>>, vector<1x1x2x128xf32>
    %80 = vector.shape_cast %79 : vector<1x1x2x128xf32> to vector<2x128xf32>
    %81 = arith.cmpf ogt, %80, %76 : vector<2x128xf32>
    %82 = arith.select %81, %80, %76 : vector<2x128xi1>, vector<2x128xf32>
    %c3_i32 = arith.constant 3 : i32
    %83 = vector.broadcast %c3_i32 : i32 to vector<2x128xi32>
    %84 = arith.select %81, %83, %78 : vector<2x128xi1>, vector<2x128xi32>
    %c0_63 = arith.constant 0 : index
    %c4 = arith.constant 4 : index
    %c0_64 = arith.constant 0 : index
    %c0_65 = arith.constant 0 : index
    %85 = vector.load %arg5[%c0_63, %c4, %c0_64, %c0_65] : memref<1x8x2x128xf32, #tpu.memory_space<vmem>>, vector<1x1x2x128xf32>
    %86 = vector.shape_cast %85 : vector<1x1x2x128xf32> to vector<2x128xf32>
    %87 = arith.cmpf ogt, %86, %82 : vector<2x128xf32>
    %88 = arith.select %87, %86, %82 : vector<2x128xi1>, vector<2x128xf32>
    %c4_i32 = arith.constant 4 : i32
    %89 = vector.broadcast %c4_i32 : i32 to vector<2x128xi32>
    %90 = arith.select %87, %89, %84 : vector<2x128xi1>, vector<2x128xi32>
    %c0_66 = arith.constant 0 : index
    %c5 = arith.constant 5 : index
    %c0_67 = arith.constant 0 : index
    %c0_68 = arith.constant 0 : index
    %91 = vector.load %arg5[%c0_66, %c5, %c0_67, %c0_68] : memref<1x8x2x128xf32, #tpu.memory_space<vmem>>, vector<1x1x2x128xf32>
    %92 = vector.shape_cast %91 : vector<1x1x2x128xf32> to vector<2x128xf32>
    %93 = arith.cmpf ogt, %92, %88 : vector<2x128xf32>
    %94 = arith.select %93, %92, %88 : vector<2x128xi1>, vector<2x128xf32>
    %c5_i32 = arith.constant 5 : i32
    %95 = vector.broadcast %c5_i32 : i32 to vector<2x128xi32>
    %96 = arith.select %93, %95, %90 : vector<2x128xi1>, vector<2x128xi32>
    %c0_69 = arith.constant 0 : index
    %c6 = arith.constant 6 : index
    %c0_70 = arith.constant 0 : index
    %c0_71 = arith.constant 0 : index
    %97 = vector.load %arg5[%c0_69, %c6, %c0_70, %c0_71] : memref<1x8x2x128xf32, #tpu.memory_space<vmem>>, vector<1x1x2x128xf32>
    %98 = vector.shape_cast %97 : vector<1x1x2x128xf32> to vector<2x128xf32>
    %99 = arith.cmpf ogt, %98, %94 : vector<2x128xf32>
    %100 = arith.select %99, %98, %94 : vector<2x128xi1>, vector<2x128xf32>
    %c6_i32 = arith.constant 6 : i32
    %101 = vector.broadcast %c6_i32 : i32 to vector<2x128xi32>
    %102 = arith.select %99, %101, %96 : vector<2x128xi1>, vector<2x128xi32>
    %c0_72 = arith.constant 0 : index
    %c7 = arith.constant 7 : index
    %c0_73 = arith.constant 0 : index
    %c0_74 = arith.constant 0 : index
    %103 = vector.load %arg5[%c0_72, %c7, %c0_73, %c0_74] : memref<1x8x2x128xf32, #tpu.memory_space<vmem>>, vector<1x1x2x128xf32>
    %104 = vector.shape_cast %103 : vector<1x1x2x128xf32> to vector<2x128xf32>
    %105 = arith.cmpf ogt, %104, %100 : vector<2x128xf32>
    %106 = arith.select %105, %104, %100 : vector<2x128xi1>, vector<2x128xf32>
    %c7_i32 = arith.constant 7 : i32
    %107 = vector.broadcast %c7_i32 : i32 to vector<2x128xi32>
    %108 = arith.select %105, %107, %102 : vector<2x128xi1>, vector<2x128xi32>
    %109 = arith.negf %106 : vector<2x128xf32>
    %110 = math.exp %109 : vector<2x128xf32>
    %cst_75 = arith.constant 1.000000e+00 : f32
    %111 = vector.broadcast %cst_75 : f32 to vector<2x128xf32>
    %112 = arith.addf %111, %110 : vector<2x128xf32>
    %113 = arith.divf %111, %112 : vector<2x128xf32>
    %c0_76 = arith.constant 0 : index
    %c0_77 = arith.constant 0 : index
    %c0_78 = arith.constant 0 : index
    %114 = vector.load %arg4[%c0_76, %c0_77, %c0_78] : memref<1x2x128xf32, #tpu.memory_space<vmem>>, vector<1x2x128xf32>
    %115 = vector.shape_cast %114 : vector<1x2x128xf32> to vector<2x128xf32>
    %116 = arith.negf %115 : vector<2x128xf32>
    %117 = math.exp %116 : vector<2x128xf32>
    %cst_79 = arith.constant 1.000000e+00 : f32
    %118 = vector.broadcast %cst_79 : f32 to vector<2x128xf32>
    %119 = arith.addf %118, %117 : vector<2x128xf32>
    %120 = arith.divf %118, %119 : vector<2x128xf32>
    %c0_80 = arith.constant 0 : index
    %c0_81 = arith.constant 0 : index
    %c0_82 = arith.constant 0 : index
    %121 = vector.load %arg7[%c0_80, %c0_81, %c0_82] : memref<1x2x128xi32, #tpu.memory_space<vmem>>, vector<1x2x128xi32>
    %122 = vector.shape_cast %121 : vector<1x2x128xi32> to vector<2x128xi32>
    %123 = vector.shape_cast %108 : vector<2x128xi32> to vector<1x2x128xi32>
    tpu.vector_store %arg7[%c0_80, %c0_81, %c0_82], %123 {strides = array<i32>} : memref<1x2x128xi32, #tpu.memory_space<vmem>>, vector<1x2x128xi32>,
    %124 = arith.mulf %120, %113 : vector<2x128xf32>
    %125 = math.sqrt %124 : vector<2x128xf32>
    %c0_83 = arith.constant 0 : index
    %c4_84 = arith.constant 4 : index
    %c0_85 = arith.constant 0 : index
    %c0_86 = arith.constant 0 : index
    %126 = vector.load %arg6[%c0_83, %c4_84, %c0_85, %c0_86] : memref<1x5x2x128xf32, #tpu.memory_space<vmem>>, vector<1x1x2x128xf32>
    %127 = vector.shape_cast %126 : vector<1x1x2x128xf32> to vector<2x128xf32>
    %128 = vector.shape_cast %125 : vector<2x128xf32> to vector<1x1x2x128xf32>
    tpu.vector_store %arg6[%c0_83, %c4_84, %c0_85, %c0_86], %128 {strides = array<i32>} : memref<1x5x2x128xf32, #tpu.memory_space<vmem>>, vector<1x1x2x128xf32>,
    return
  }
  func.func @transform_0(%arg0: i32, %arg1: i32) -> (i32, i32, i32) {
    %c0_i32 = arith.constant 0 : i32
    %c0_i32_0 = arith.constant 0 : i32
    %c0_i32_1 = arith.constant 0 : i32
    return %c0_i32, %arg1, %c0_i32_0 : i32, i32, i32
  }
  func.func @transform_1(%arg0: i32, %arg1: i32) -> (i32, i32, i32, i32) {
    %c0_i32 = arith.constant 0 : i32
    %c0_i32_0 = arith.constant 0 : i32
    %c0_i32_1 = arith.constant 0 : i32
    return %arg0, %c0_i32, %arg1, %c0_i32_0 : i32, i32, i32, i32
  }
  func.func @transform_2(%arg0: i32, %arg1: i32) -> (i32, i32, i32) {
    %c0_i32 = arith.constant 0 : i32
    %c0_i32_0 = arith.constant 0 : i32
    return %arg0, %arg1, %c0_i32 : i32, i32, i32
  }
  func.func @transform_3(%arg0: i32, %arg1: i32) -> (i32, i32, i32, i32) {
    %c0_i32 = arith.constant 0 : i32
    %c0_i32_0 = arith.constant 0 : i32
    %c0_i32_1 = arith.constant 0 : i32
    return %arg0, %c0_i32, %arg1, %c0_i32_0 : i32, i32, i32, i32
  }
  func.func @transform_4(%arg0: i32, %arg1: i32) -> (i32, i32, i32, i32) {
    %c0_i32 = arith.constant 0 : i32
    %c0_i32_0 = arith.constant 0 : i32
    %c0_i32_1 = arith.constant 0 : i32
    return %arg0, %c0_i32, %arg1, %c0_i32_0 : i32, i32, i32, i32
  }
  func.func @transform_5(%arg0: i32, %arg1: i32) -> (i32, i32, i32) {
    %c0_i32 = arith.constant 0 : i32
    %c0_i32_0 = arith.constant 0 : i32
    return %arg0, %arg1, %c0_i32 : i32, i32, i32
  }
}

</mosaic_0001>

<llo_original>
// kernel: fcos_atss_inference.1
$region0: #{fcos_atss_inference.1}
  #allocation0 [shape = 'u32[]', space=smem, size = 0x4, offset = 0x4, fixed_abs, tag = 'smem constant byte address 0x4 - core index']
  #allocation1 [shape = 'u32[144,128]{1,0:T(1,128)}', space=vmem, size = 0x12000, scoped, tag = 'internal scratch']
  %s0 = inlined_call_operand.vmem [shape: f32[2,2,128], index: 0, kind: input, shape index: {}]
  %s1 = inlined_call_operand.vmem [shape: f32[2,4,2,128], index: 1, kind: input, shape index: {}]
  %s2 = inlined_call_operand.vmem [shape: f32[2,2,128], index: 2, kind: input, shape index: {}]
  %s3 = inlined_call_operand.vmem [shape: f32[2,8,2,128], index: 3, kind: input, shape index: {}]
  %s4 = inlined_call_operand.vmem [shape: f32[2,5,2,128], index: 4, kind: output, shape index: {0}]
  %s5 = inlined_call_operand.vmem [shape: s32[2,2,128], index: 5, kind: output, shape index: {1}]
  %6 = xla_tuple %s4, %s5
  %s7 = sld [smem:[#allocation0]]
  $region57: #{fcos_atss_inference.1} parent=0
    _
  %s9 = ssub.s32 1, %s7
  %s10 = scalar_select 0, %s9, %s7
  loop: start=0, step=1, limit=4
  $region2: #{fcos_atss_inference.1} parent=0 // loop_pre_header
    _
  $region3: #{fcos_atss_inference.1} parent=0 // loop_header
    %s12 = sphi 0, %s16
    %p13 = scmp.ge.s32.totalorder %s12, 4
    %s19 = sphi 0, %s31
    %s20 = sphi 0, %s27
    %s21 = sphi 0, %s19
    %s22 = sphi 0, %s20
    %s23 = sphi 0, %s21
    %s24 = sphi 0, %s22
    %s34 = sphi 0, %s36
    %s37 = sphi 0, %s34
    %s38 = sphi 0, %s37
    %s54 = sphi 0, %s38
    %s62 = sphi 0, %s64
    %s65 = sphi 0, %s62
    %s66 = sphi 0, %s65
    %s82 = sphi 0, %s66
    %s90 = sphi 0, %s92
    %s93 = sphi 0, %s90
    %s94 = sphi 0, %s93
    %s110 = sphi 0, %s94
    %s118 = sphi 0, %s120
    %s121 = sphi 0, %s118
    %s122 = sphi 0, %s121
    %s138 = sphi 0, %s122
    %s146 = sphi 0, %s148
    %s149 = sphi 0, %s146
    %s150 = sphi 0, %s149
    %s166 = sphi 0, %s150
    %s174 = sphi 0, %s176
    %s177 = sphi 0, %s174
    %s178 = sphi 0, %s177
    %s194 = sphi 0, %s178
  $region4: #{fcos_atss_inference.1} parent=0 // loop_header_branch
    %15 = sbr.rel (%p13) target = $region8
  $region5: #{fcos_atss_inference.1} parent=0 // loop_body
    %s17 = ssub.s32 %s12, 1
    %s18 = ssub.s32 %s12, 2
    %s25 = sadd.s32 1, %s20
    %p26 = scmp.ge.s32.totalorder %s25, 1
    %s27 = scalar_select %p26, 0, %s25
    %s28 = sadd.s32 1, %s19
    %s29 = scalar_select %p26, %s28, %s19
    %p30 = scmp.ge.s32.totalorder %s29, 2
    %s31 = scalar_select %p30, 0, %s29
    %s32 = ssub.s32 %s20, %s27
    %p33 = scmp.eq.s32.totalorder %s32, 0
    %s35 = sadd.s32 %s34, 1
    %s36 = scalar_select %p33, %s34, %s35
    %p39 = pneg %p33
    %p40 = scmp.eq.s32.totalorder %s12, 1
    %p41 = por %p39, %p40
    %p42 = scmp.ne.s32.totalorder %s34, %s37
    %p43 = scmp.eq.s32.totalorder %s12, 0
    %p44 = por %p42, %p43
    %p45 = scmp.ne.s32.totalorder %s34, %s37
    %p46 = scmp.eq.s32.totalorder %s17, 1
    %p47 = por %p45, %p46
    %p48 = scmp.ne.s32.totalorder %s37, %s38
    %p49 = scmp.eq.s32.totalorder %s17, 0
    %p50 = por %p48, %p49
    %p51 = scmp.ne.s32.totalorder %s37, %s38
    %p52 = scmp.eq.s32.totalorder %s18, 1
    %p53 = por %p51, %p52
    %p55 = scmp.ne.s32.totalorder %s38, %s54
    %p56 = scmp.eq.s32.totalorder %s18, 0
    %p57 = por %p55, %p56
    %s58 = ssub.s32 %s19, %s31
    %s59 = ssub.s32 %s20, %s27
    %s60 = sor.u32 %s58, %s59
    %p61 = scmp.eq.s32.totalorder %s60, 0
    %s63 = sadd.s32 %s62, 1
    %s64 = scalar_select %p61, %s62, %s63
    %p67 = pneg %p61
    %p68 = scmp.eq.s32.totalorder %s12, 1
    %p69 = por %p67, %p68
    %p70 = scmp.ne.s32.totalorder %s62, %s65
    %p71 = scmp.eq.s32.totalorder %s12, 0
    %p72 = por %p70, %p71
    %p73 = scmp.ne.s32.totalorder %s62, %s65
    %p74 = scmp.eq.s32.totalorder %s17, 1
    %p75 = por %p73, %p74
    %p76 = scmp.ne.s32.totalorder %s65, %s66
    %p77 = scmp.eq.s32.totalorder %s17, 0
    %p78 = por %p76, %p77
    %p79 = scmp.ne.s32.totalorder %s65, %s66
    %p80 = scmp.eq.s32.totalorder %s18, 1
    %p81 = por %p79, %p80
    %p83 = scmp.ne.s32.totalorder %s66, %s82
    %p84 = scmp.eq.s32.totalorder %s18, 0
    %p85 = por %p83, %p84
    %s86 = ssub.s32 %s19, %s31
    %s87 = ssub.s32 %s20, %s27
    %s88 = sor.u32 %s86, %s87
    %p89 = scmp.eq.s32.totalorder %s88, 0
    %s91 = sadd.s32 %s90, 1
    %s92 = scalar_select %p89, %s90, %s91
    %p95 = pneg %p89
    %p96 = scmp.eq.s32.totalorder %s12, 1
    %p97 = por %p95, %p96
    %p98 = scmp.ne.s32.totalorder %s90, %s93
    %p99 = scmp.eq.s32.totalorder %s12, 0
    %p100 = por %p98, %p99
    %p101 = scmp.ne.s32.totalorder %s90, %s93
    %p102 = scmp.eq.s32.totalorder %s17, 1
    %p103 = por %p101, %p102
    %p104 = scmp.ne.s32.totalorder %s93, %s94
    %p105 = scmp.eq.s32.totalorder %s17, 0
    %p106 = por %p104, %p105
    %p107 = scmp.ne.s32.totalorder %s93, %s94
    %p108 = scmp.eq.s32.totalorder %s18, 1
    %p109 = por %p107, %p108
    %p111 = scmp.ne.s32.totalorder %s94, %s110
    %p112 = scmp.eq.s32.totalorder %s18, 0
    %p113 = por %p111, %p112
    %s114 = ssub.s32 %s19, %s31
    %s115 = ssub.s32 %s20, %s27
    %s116 = sor.u32 %s114, %s115
    %p117 = scmp.eq.s32.totalorder %s116, 0
    %s119 = sadd.s32 %s118, 1
    %s120 = scalar_select %p117, %s118, %s119
    %p123 = pneg %p117
    %p124 = scmp.eq.s32.totalorder %s12, 1
    %p125 = por %p123, %p124
    %p126 = scmp.ne.s32.totalorder %s118, %s121
    %p127 = scmp.eq.s32.totalorder %s12, 0
    %p128 = por %p126, %p127
    %p129 = scmp.ne.s32.totalorder %s118, %s121
    %p130 = scmp.eq.s32.totalorder %s17, 1
    %p131 = por %p129, %p130
    %p132 = scmp.ne.s32.totalorder %s121, %s122
    %p133 = scmp.eq.s32.totalorder %s17, 0
    %p134 = por %p132, %p133
    %p135 = scmp.ne.s32.totalorder %s121, %s122
    %p136 = scmp.eq.s32.totalorder %s18, 1
    %p137 = por %p135, %p136
    %p139 = scmp.ne.s32.totalorder %s122, %s138
    %p140 = scmp.eq.s32.totalorder %s18, 0
    %p141 = por %p139, %p140
    %s142 = ssub.s32 %s19, %s31
    %s143 = ssub.s32 %s20, %s27
    %s144 = sor.u32 %s142, %s143
    %p145 = scmp.eq.s32.totalorder %s144, 0
    %s147 = sadd.s32 %s146, 1
    %s148 = scalar_select %p145, %s146, %s147
    %p151 = pneg %p145
    %p152 = scmp.eq.s32.totalorder %s12, 1
    %p153 = por %p151, %p152
    %p154 = scmp.ne.s32.totalorder %s146, %s149
    %p155 = scmp.eq.s32.totalorder %s12, 0
    %p156 = por %p154, %p155
    %p157 = scmp.ne.s32.totalorder %s146, %s149
    %p158 = scmp.eq.s32.totalorder %s17, 1
    %p159 = por %p157, %p158
    %p160 = scmp.ne.s32.totalorder %s149, %s150
    %p161 = scmp.eq.s32.totalorder %s17, 0
    %p162 = por %p160, %p161
    %p163 = scmp.ne.s32.totalorder %s149, %s150
    %p164 = scmp.eq.s32.totalorder %s18, 1
    %p165 = por %p163, %p164
    %p167 = scmp.ne.s32.totalorder %s150, %s166
    %p168 = scmp.eq.s32.totalorder %s18, 0
    %p169 = por %p167, %p168
    %s170 = ssub.s32 %s19, %s31
    %s171 = ssub.s32 %s20, %s27
    %s172 = sor.u32 %s170, %s171
    %p173 = scmp.eq.s32.totalorder %s172, 0
    %s175 = sadd.s32 %s174, 1
    %s176 = scalar_select %p173, %s174, %s175
    %p179 = pneg %p173
    %p180 = scmp.eq.s32.totalorder %s12, 1
    %p181 = por %p179, %p180
    %p182 = scmp.ne.s32.totalorder %s174, %s177
    %p183 = scmp.eq.s32.totalorder %s12, 0
    %p184 = por %p182, %p183
    %p185 = scmp.ne.s32.totalorder %s174, %s177
    %p186 = scmp.eq.s32.totalorder %s17, 1
    %p187 = por %p185, %p186
    %p188 = scmp.ne.s32.totalorder %s177, %s178
    %p189 = scmp.eq.s32.totalorder %s17, 0
    %p190 = por %p188, %p189
    %p191 = scmp.ne.s32.totalorder %s177, %s178
    %p192 = scmp.eq.s32.totalorder %s18, 1
    %p193 = por %p191, %p192
    %p195 = scmp.ne.s32.totalorder %s178, %s194
    %p196 = scmp.eq.s32.totalorder %s18, 0
    %p197 = por %p195, %p196
    %p198 = scmp.le.s32.totalorder 1, %s12
    %p199 = scmp.lt.s32.totalorder %s12, 3
    %p200 = pnand %p198, %p199
    %p201 = pneg %p200
    // Predicated region
    $region9: #{fcos_atss_inference.1} parent=5 // pred_check
      _
    $region10: #{fcos_atss_inference.1} parent=5 // pred_check_branch
      %203 = sbr.rel (%p200) target = $region12
    $region11: #{fcos_atss_inference.1} parent=5 // pred_region
      %s204 = ssub.s32 %s12, 1
      // Predicated region
      $region13: #{fcos_atss_inference.1} parent=11 // pred_check
        %p205 = pneg %p50
      $region14: #{fcos_atss_inference.1} parent=11 // pred_check_branch
        %207 = sbr.rel (%p205) target = $region16
      $region15: #{fcos_atss_inference.1} parent=11 // pred_region
        %p208 = scmp.lt.s32.totalorder %s22, 0
        %s209 = scalar_select %p208, %s22, 0
        %s210 = smul.addr %s209, 2
        %s211 = scalar_lea.vmem %s0, %s210
      $region16: #{fcos_atss_inference.1} parent=11 // pred_fallthru
        _
    $region12: #{fcos_atss_inference.1} parent=5 // pred_fallthru
      _
    %p212 = scmp.lt.s32.totalorder %s12, 2
    // Predicated region
    $region17: #{fcos_atss_inference.1} parent=5 // pred_check
      %p213 = pneg %p212
    $region18: #{fcos_atss_inference.1} parent=5 // pred_check_branch
      %215 = sbr.rel (%p213) target = $region20
    $region19: #{fcos_atss_inference.1} parent=5 // pred_region
      // Predicated region
      $region21: #{fcos_atss_inference.1} parent=19 // pred_check
        %p216 = pneg %p72
      $region22: #{fcos_atss_inference.1} parent=19 // pred_check_branch
        %218 = sbr.rel (%p216) target = $region24
      $region23: #{fcos_atss_inference.1} parent=19 // pred_region
        %p219 = scmp.lt.s32.totalorder %s19, 1
        %s220 = scalar_select %p219, %s19, 1
        %p221 = scmp.lt.s32.totalorder %s20, 0
        %s222 = scalar_select %p221, %s20, 0
        %s223 = smul.addr %s220, 4
        %s224 = sadd.s32 %s222, %s223
        %s225 = smul.addr %s224, 2
        %s226 = scalar_lea.vmem %s1, %s225
      $region24: #{fcos_atss_inference.1} parent=19 // pred_fallthru
        _
      // Predicated region
      $region25: #{fcos_atss_inference.1} parent=19 // pred_check
        %p227 = pneg %p100
      $region26: #{fcos_atss_inference.1} parent=19 // pred_check_branch
        %229 = sbr.rel (%p227) target = $region28
      $region27: #{fcos_atss_inference.1} parent=19 // pred_region
        %p230 = scmp.lt.s32.totalorder %s19, 1
        %s231 = scalar_select %p230, %s19, 1
        %p232 = scmp.lt.s32.totalorder %s20, 0
        %s233 = scalar_select %p232, %s20, 0
        %s234 = sadd.s32 %s233, %s231
        %s235 = smul.addr %s234, 2
        %s236 = scalar_lea.vmem %s2, %s235
      $region28: #{fcos_atss_inference.1} parent=19 // pred_fallthru
        _
      // Predicated region
      $region29: #{fcos_atss_inference.1} parent=19 // pred_check
        %p237 = pneg %p128
      $region30: #{fcos_atss_inference.1} parent=19 // pred_check_branch
        %239 = sbr.rel (%p237) target = $region32
      $region31: #{fcos_atss_inference.1} parent=19 // pred_region
        %p240 = scmp.lt.s32.totalorder %s19, 1
        %s241 = scalar_select %p240, %s19, 1
        %p242 = scmp.lt.s32.totalorder %s20, 0
        %s243 = scalar_select %p242, %s20, 0
        %s244 = smul.addr %s241, 8
        %s245 = sadd.s32 %s243, %s244
        %s246 = smul.addr %s245, 2
        %s247 = scalar_lea.vmem %s3, %s246
      $region32: #{fcos_atss_inference.1} parent=19 // pred_fallthru
        _
    $region20: #{fcos_atss_inference.1} parent=5 // pred_fallthru
      _
    %p248 = scmp.le.s32.totalorder 1, %s12
    %p249 = scmp.lt.s32.totalorder %s12, 3
    %p250 = pnand %p248, %p249
    %p251 = pneg %p250
    // Predicated region
    $region33: #{fcos_atss_inference.1} parent=5 // pred_check
      _
    $region34: #{fcos_atss_inference.1} parent=5 // pred_check_branch
      %253 = sbr.rel (%p250) target = $region36
    $region35: #{fcos_atss_inference.1} parent=5 // pred_region
      %s254 = ssub.s32 %s12, 1
      %p255 = scmp.lt.s32.totalorder %s22, 0
      %s256 = scalar_select %p255, %s22, 0
      %s257 = smul.addr %s256, 2
      %s258 = scalar_lea.vmem %s0, %s257
      %p259 = pneg %p50
      %p260 = pneg %p47
      %p261 = scmp.lt.s32.totalorder %s21, 1
      %s262 = scalar_select %p261, %s21, 1
      %p263 = scmp.lt.s32.totalorder %s22, 0
      %s264 = scalar_select %p263, %s22, 0
      %s265 = smul.addr %s262, 4
      %s266 = sadd.s32 %s264, %s265
      %s267 = smul.addr %s266, 2
      %s268 = scalar_lea.vmem %s1, %s267
      %p269 = pneg %p78
      %p270 = pneg %p75
      %p271 = scmp.lt.s32.totalorder %s21, 1
      %s272 = scalar_select %p271, %s21, 1
      %p273 = scmp.lt.s32.totalorder %s22, 0
      %s274 = scalar_select %p273, %s22, 0
      %s275 = sadd.s32 %s274, %s272
      %s276 = smul.addr %s275, 2
      %s277 = scalar_lea.vmem %s2, %s276
      %p278 = pneg %p106
      %p279 = pneg %p103
      %p280 = scmp.lt.s32.totalorder %s21, 1
      %s281 = scalar_select %p280, %s21, 1
      %p282 = scmp.lt.s32.totalorder %s22, 0
      %s283 = scalar_select %p282, %s22, 0
      %s284 = smul.addr %s281, 8
      %s285 = sadd.s32 %s283, %s284
      %s286 = smul.addr %s285, 2
      %s287 = scalar_lea.vmem %s3, %s286
      %p288 = pneg %p134
      %p289 = pneg %p131
      %p290 = pneg %p162
      %p291 = pneg %p159
      %p292 = scmp.lt.s32.totalorder %s21, 1
      %s293 = scalar_select %p292, %s21, 1
      %p294 = scmp.lt.s32.totalorder %s22, 0
      %s295 = scalar_select %p294, %s22, 0
      %s296 = smul.addr %s293, 5
      %s297 = sadd.s32 %s295, %s296
      %s298 = smul.addr %s297, 2
      %s299 = scalar_lea.vmem %s4, %s298
      %p300 = pneg %p190
      %p301 = pneg %p187
      %p302 = scmp.lt.s32.totalorder %s21, 1
      %s303 = scalar_select %p302, %s21, 1
      %p304 = scmp.lt.s32.totalorder %s22, 0
      %s305 = scalar_select %p304, %s22, 0
      %s306 = sadd.s32 %s305, %s303
      %s307 = smul.addr %s306, 2
      %s308 = scalar_lea.vmem %s5, %s307
      %p309 = scmp.lt.s32.totalorder %s22, 0
      %s310 = scalar_select %p309, %s22, 0
      %s311 = smul.addr %s310, 2
      %s312 = scalar_lea.vmem %s0, %s311
      %p313 = scmp.lt.s32.totalorder %s21, 1
      %s314 = scalar_select %p313, %s21, 1
      %p315 = scmp.lt.s32.totalorder %s22, 0
      %s316 = scalar_select %p315, %s22, 0
      %s317 = smul.addr %s314, 4
      %s318 = sadd.s32 %s316, %s317
      %s319 = smul.addr %s318, 2
      %s320 = scalar_lea.vmem %s1, %s319
      %p321 = scmp.lt.s32.totalorder %s21, 1
      %s322 = scalar_select %p321, %s21, 1
      %p323 = scmp.lt.s32.totalorder %s22, 0
      %s324 = scalar_select %p323, %s22, 0
      %s325 = sadd.s32 %s324, %s322
      %s326 = smul.addr %s325, 2
      %s327 = scalar_lea.vmem %s2, %s326
      %p328 = scmp.lt.s32.totalorder %s21, 1
      %s329 = scalar_select %p328, %s21, 1
      %p330 = scmp.lt.s32.totalorder %s22, 0
      %s331 = scalar_select %p330, %s22, 0
      %s332 = smul.addr %s329, 8
      %s333 = sadd.s32 %s331, %s332
      %s334 = smul.addr %s333, 2
      %s335 = scalar_lea.vmem %s3, %s334
      %p336 = scmp.lt.s32.totalorder %s21, 1
      %s337 = scalar_select %p336, %s21, 1
      %p338 = scmp.lt.s32.totalorder %s22, 0
      %s339 = scalar_select %p338, %s22, 0
      %s340 = smul.addr %s337, 5
      %s341 = sadd.s32 %s339, %s340
      %s342 = smul.addr %s341, 2
      %s343 = scalar_lea.vmem %s4, %s342
      %p344 = scmp.lt.s32.totalorder %s21, 1
      %s345 = scalar_select %p344, %s21, 1
      %p346 = scmp.lt.s32.totalorder %s22, 0
      %s347 = scalar_select %p346, %s22, 0
      %s348 = sadd.s32 %s347, %s345
      %s349 = smul.addr %s348, 2
      %s350 = scalar_lea.vmem %s5, %s349
      %v351 = vld [vmem:[%s312] sm:$0x3]
      %s352 = scalar_lea.vmem %s312, 2
      %v353 = vld [vmem:[%s352] sm:$0x3]
      %v354 = vld [vmem:[%s320] sm:$0x3]
      %v355 = vmul.f32 %v354, 1.442695
      %v356 = vpow.pop %v355
      %v357 = vmul.f32 %v356, 8.0
      %s358 = scalar_lea.vmem %s320, 2
      %v359 = vld [vmem:[%s358] sm:$0x3]
      %v360 = vmul.f32 %v359, 1.442695
      %v361 = vpow.pop %v360
      %v362 = vmul.f32 %v361, 8.0
      %s363 = scalar_lea.vmem %s320, 4
      %v364 = vld [vmem:[%s363] sm:$0x3]
      %v365 = vmul.f32 %v364, 1.442695
      %v366 = vpow.pop %v365
      %v367 = vmul.f32 %v366, 8.0
      %s368 = scalar_lea.vmem %s320, 6
      %v369 = vld [vmem:[%s368] sm:$0x3]
      %v370 = vmul.f32 %v369, 1.442695
      %v371 = vpow.pop %v370
      %v372 = vmul.f32 %v371, 8.0
      %v373 = vsub.f32 %v351, %v357
      %v374 = vmax.f32 %v373, 0.0
      %v375 = vmin.f32 %v374, 128.0
      %v376 = vsub.f32 %v353, %v362
      %v377 = vmax.f32 %v376, 0.0
      %v378 = vmin.f32 %v377, 128.0
      %v379 = vadd.f32 %v351, %v367
      %v380 = vmax.f32 %v379, 0.0
      %v381 = vmin.f32 %v380, 128.0
      %v382 = vadd.f32 %v353, %v372
      %v383 = vmax.f32 %v382, 0.0
      %v384 = vmin.f32 %v383, 128.0
      %v385 = vadd.f32 %v375, %v381
      %v386 = vmul.f32 %v385, 0.5
      %387 = vst [vmem:[%s343] sm:$0x3] %v386
      %v388 = vadd.f32 %v378, %v384
      %v389 = vmul.f32 %v388, 0.5
      %s390 = scalar_lea.vmem %s343, 2
      %391 = vst [vmem:[%s390] sm:$0x3] %v389
      %v392 = vsub.f32 %v381, %v375
      %s393 = scalar_lea.vmem %s343, 4
      %394 = vst [vmem:[%s393] sm:$0x3] %v392
      %v395 = vsub.f32 %v384, %v378
      %s396 = scalar_lea.vmem %s343, 6
      %397 = vst [vmem:[%s396] sm:$0x3] %v395
      %v398 = vld [vmem:[%s335] sm:$0x3]
      %s399 = scalar_lea.vmem %s335, 2
      %v400 = vld [vmem:[%s399] sm:$0x3]
      %vm401 = vcmp.gt.f32.partialorder %v400, %v398
      %v402 = vsel %vm401, %v400, %v398
      %v403 = vsel %vm401, 1, 0
      %s404 = scalar_lea.vmem %s335, 4
      %v405 = vld [vmem:[%s404] sm:$0x3]
      %vm406 = vcmp.gt.f32.partialorder %v405, %v402
      %v407 = vsel %vm406, %v405, %v402
      %v408 = vsel %vm406, 2, %v403
      %s409 = scalar_lea.vmem %s335, 6
      %v410 = vld [vmem:[%s409] sm:$0x3]
      %vm411 = vcmp.gt.f32.partialorder %v410, %v407
      %v412 = vsel %vm411, %v410, %v407
      %v413 = vsel %vm411, 3, %v408
      %s414 = scalar_lea.vmem %s335, 8
      %v415 = vld [vmem:[%s414] sm:$0x3]
      %vm416 = vcmp.gt.f32.partialorder %v415, %v412
      %v417 = vsel %vm416, %v415, %v412
      %v418 = vsel %vm416, 4, %v413
      %s419 = scalar_lea.vmem %s335, 10
      %v420 = vld [vmem:[%s419] sm:$0x3]
      %vm421 = vcmp.gt.f32.partialorder %v420, %v417
      %v422 = vsel %vm421, %v420, %v417
      %v423 = vsel %vm421, 5, %v418
      %s424 = scalar_lea.vmem %s335, 12
      %v425 = vld [vmem:[%s424] sm:$0x3]
      %vm426 = vcmp.gt.f32.partialorder %v425, %v422
      %v427 = vsel %vm426, %v425, %v422
      %v428 = vsel %vm426, 6, %v423
      %s429 = scalar_lea.vmem %s335, 14
      %v430 = vld [vmem:[%s429] sm:$0x3]
      %vm431 = vcmp.gt.f32.partialorder %v430, %v427
      %v432 = vsel %vm431, %v430, %v427
      %v433 = vsel %vm431, 7, %v428
      %v434 = vxor.u32 %v432, 2147483648
      %v435 = vmul.f32 %v434, 1.442695
      %v436 = vpow.pop %v435
      %v437 = vadd.f32 %v436, 1.0
      %v438 = vrcp.pop %v437
      %v439 = vmul.f32 1.0, %v438
      %v440 = vld [vmem:[%s327] sm:$0x3]
      %v441 = vxor.u32 %v440, 2147483648
      %v442 = vmul.f32 %v441, 1.442695
      %v443 = vpow.pop %v442
      %v444 = vadd.f32 %v443, 1.0
      %v445 = vrcp.pop %v444
      %v446 = vmul.f32 1.0, %v445
      %447 = vst [vmem:[%s350] sm:$0x3] %v433
      %v448 = vmul.f32 %v446, %v439
      %v449 = vrsqrt.pop %v448
      %v450 = vmul.f32 %v448, %v449
      %vm451 = vcmp.eq.f32.partialorder %v448, inf
      %v452 = vsel %vm451, %v448, %v450
      %vm453 = vcmp.eq.f32.partialorder %v448, 0.0
      %v454 = vand.u32 %v448, 2147483648
      %v455 = vsel %vm453, %v454, %v452
      %s456 = scalar_lea.vmem %s343, 8
      %457 = vst [vmem:[%s456] sm:$0x3] %v455
      %p458 = scmp.lt.s32.totalorder %s21, 1
      %s459 = scalar_select %p458, %s21, 1
      %p460 = scmp.lt.s32.totalorder %s22, 0
      %s461 = scalar_select %p460, %s22, 0
      %s462 = smul.addr %s459, 5
      %s463 = sadd.s32 %s461, %s462
      %s464 = smul.addr %s463, 2
      %s465 = scalar_lea.vmem %s4, %s464
      %p466 = scmp.lt.s32.totalorder %s21, 1
      %s467 = scalar_select %p466, %s21, 1
      %p468 = scmp.lt.s32.totalorder %s22, 0
      %s469 = scalar_select %p468, %s22, 0
      %s470 = sadd.s32 %s469, %s467
      %s471 = smul.addr %s470, 2
      %s472 = scalar_lea.vmem %s5, %s471
      // Predicated region
      $region37: #{fcos_atss_inference.1} parent=35 // pred_check
        %p473 = pneg %p159
      $region38: #{fcos_atss_inference.1} parent=35 // pred_check_branch
        %475 = sbr.rel (%p473) target = $region40
      $region39: #{fcos_atss_inference.1} parent=35 // pred_region
        _
      $region40: #{fcos_atss_inference.1} parent=35 // pred_fallthru
        _
      // Predicated region
      $region41: #{fcos_atss_inference.1} parent=35 // pred_check
        %p476 = pneg %p187
      $region42: #{fcos_atss_inference.1} parent=35 // pred_check_branch
        %478 = sbr.rel (%p476) target = $region44
      $region43: #{fcos_atss_inference.1} parent=35 // pred_region
        _
      $region44: #{fcos_atss_inference.1} parent=35 // pred_fallthru
        _
    $region36: #{fcos_atss_inference.1} parent=5 // pred_fallthru
      _
    %p479 = scmp.le.s32.totalorder 2, %s12
    // Predicated region
    $region45: #{fcos_atss_inference.1} parent=5 // pred_check
      %p480 = pneg %p479
    $region46: #{fcos_atss_inference.1} parent=5 // pred_check_branch
      %482 = sbr.rel (%p480) target = $region48
    $region47: #{fcos_atss_inference.1} parent=5 // pred_region
      %s483 = ssub.s32 %s12, 2
      // Predicated region
      $region49: #{fcos_atss_inference.1} parent=47 // pred_check
        %p484 = pneg %p165
      $region50: #{fcos_atss_inference.1} parent=47 // pred_check_branch
        %486 = sbr.rel (%p484) target = $region52
      $region51: #{fcos_atss_inference.1} parent=47 // pred_region
        %p487 = scmp.lt.s32.totalorder %s23, 1
        %s488 = scalar_select %p487, %s23, 1
        %p489 = scmp.lt.s32.totalorder %s24, 0
        %s490 = scalar_select %p489, %s24, 0
        %s491 = smul.addr %s488, 5
        %s492 = sadd.s32 %s490, %s491
        %s493 = smul.addr %s492, 2
        %s494 = scalar_lea.vmem %s4, %s493
      $region52: #{fcos_atss_inference.1} parent=47 // pred_fallthru
        _
      // Predicated region
      $region53: #{fcos_atss_inference.1} parent=47 // pred_check
        %p495 = pneg %p193
      $region54: #{fcos_atss_inference.1} parent=47 // pred_check_branch
        %497 = sbr.rel (%p495) target = $region56
      $region55: #{fcos_atss_inference.1} parent=47 // pred_region
        %p498 = scmp.lt.s32.totalorder %s23, 1
        %s499 = scalar_select %p498, %s23, 1
        %p500 = scmp.lt.s32.totalorder %s24, 0
        %s501 = scalar_select %p500, %s24, 0
        %s502 = sadd.s32 %s501, %s499
        %s503 = smul.addr %s502, 2
        %s504 = scalar_lea.vmem %s5, %s503
      $region56: #{fcos_atss_inference.1} parent=47 // pred_fallthru
        _
    $region48: #{fcos_atss_inference.1} parent=5 // pred_fallthru
      _
  $region6: #{fcos_atss_inference.1} parent=0 // loop_footer
    %s16 = sadd.s32 1, %s12
  $region7: #{fcos_atss_inference.1} parent=0 // loop_footer_branch
    %11 = sbr.rel target = $region3
  $region8: #{fcos_atss_inference.1} parent=0 // loop_exit
    _

</llo_original>
